<compile_context>
chip_gen: v6e
topology: v6e:2x2x1
jax: 0.10.0
libtpu: 0.0.40
codegen_flags: <defaults>
</compile_context>

<pallas_src>
import math

import jax
import jax.numpy as jnp
from jax import lax
from jax.experimental import pallas as pl
from jax.experimental.pallas import tpu as pltpu


def _conv3x3s2_kernel(s0_ref, s1_ref, s2_ref, w_ref, b_ref, out_ref):
    """One grid step = one image x one tile of output positions.

    s{ky}_ref : (tm, 3*Cin)   packed kx taps for row tap ky (bf16)
    w_ref     : (3, Cout, 3*Cin) packed weights, lane index = kx*Cin + cin (bf16)
    b_ref     : (Cout, 1)     float32 bias
    out_ref   : (Cout, tm)    NCHW-flat output tile (lane dim = spatial)
    """
    cout, tm = out_ref.shape
    # Bias-initialized f32 accumulator: removes the post-add and the repeated
    # broadcast of the old per-image loop.
    acc = jnp.broadcast_to(b_ref[...], (cout, tm))
    for ky, s_ref in enumerate((s0_ref, s1_ref, s2_ref)):
        acc = acc + lax.dot_general(
            w_ref[ky], s_ref[...],
            dimension_numbers=(((1,), (1,)), ((), ())),   # (Cout,3Cin) x (tm,3Cin)^T
            preferred_element_type=jnp.float32)
    out_ref[...] = acc.astype(out_ref.dtype)


def _pick_m_tile(m, target=512):
    """Spatial tile (lane dim of the output block). Keeps the f32 accumulator
    bounded (review: 256-512 lane chunks) while staying lane-dense (>=128)."""
    if m <= target:
        return m
    for t in (512, 384, 256):          # prefer exact divisors, all %128 == 0
        if m % t == 0:
            return t
    return 512                          # partial last block: Pallas masks it


def downsample(x, weight, bias, *, compute_dtype=jnp.bfloat16):
    """Conv2d(in_channels, out_channels, kernel_size=3, stride=2, padding=1).

    x: (N, Cin, H, W)   weight: (Cout, Cin, 3, 3)   bias: (Cout,)
    returns (N, Cout, Ho, Wo) with Ho = (H + 2 - 3)//2 + 1 (same for W).
    """
    N, Cin, H, W = x.shape
    Cout = weight.shape[0]
    Ho = (H + 2 - 3) // 2 + 1
    Wo = (W + 2 - 3) // 2 + 1
    M = Ho * Wo                 # output positions per image
    K = 3 * Cin                 # packed contraction depth

    # ---- glue: one fused XLA pass (transpose + pad + phase/tap pack, bf16) ----
    xh = jnp.transpose(x, (0, 2, 3, 1)).astype(compute_dtype)     # (N,H,W,Cin)
    xp = jnp.pad(xh, ((0, 0), (1, 1), (1, 1), (0, 0)))            # (N,H+2,W+2,Cin)

    def ky_stream(ky):
        rows = xp[:, ky:ky + 2 * Ho - 1:2]                        # (N,Ho,W+2,Cin)
        taps = [rows[:, :, kx:kx + 2 * Wo - 1:2, :] for kx in range(3)]
        packed = jnp.concatenate(taps, axis=-1)                   # (N,Ho,Wo,3*Cin)
        return packed.reshape(N, M, K)

    streams = [ky_stream(ky) for ky in range(3)]                  # 3 x (N, M, K)

    # weights: (Cout,Cin,3,3) -> (ky, Cout, kx, Cin) -> (3, Cout, 3*Cin)
    wk = jnp.transpose(weight, (2, 0, 3, 1)).reshape(3, Cout, K).astype(compute_dtype)
    b2 = bias.reshape(Cout, 1).astype(jnp.float32)

    tm = _pick_m_tile(M)
    grid = (N, pl.cdiv(M, tm))

    stream_spec = pl.BlockSpec((None, tm, K), lambda b, mi: (b, mi, 0))

    # Generation-portable VMEM budget: actual footprint + headroom, <= 40 MiB
    # so it also fits v7x's 64 MiB/TC (v5e/v6e have 128 MiB).
    itemsize = jnp.dtype(compute_dtype).itemsize
    out_itemsize = jnp.dtype(x.dtype).itemsize
    step_bytes = (3 * 2 * tm * K * itemsize            # double-buffered streams
                  + 2 * Cout * tm * out_itemsize       # double-buffered output
                  + 3 * Cout * K * itemsize + Cout * 4 # weights + bias (resident)
                  + Cout * tm * 4)                     # f32 accumulator
    vmem_limit = int(min(max(3 * step_bytes + (8 << 20), 16 << 20), 40 << 20))

    cost = pl.CostEstimate(
        flops=2 * N * M * 9 * Cin * Cout,
        transcendentals=0,
        bytes_accessed=int(3 * N * M * K * itemsize
                           + 3 * Cout * K * itemsize + Cout * 4
                           + N * Cout * M * out_itemsize))

    out_flat = pl.pallas_call(
        _conv3x3s2_kernel,
        out_shape=jax.ShapeDtypeStruct((N, Cout, M), x.dtype),
        grid=grid,
        in_specs=[stream_spec, stream_spec, stream_spec,
                  pl.BlockSpec((3, Cout, K), lambda b, mi: (0, 0, 0)),
                  pl.BlockSpec((Cout, 1), lambda b, mi: (0, 0))],
        out_specs=pl.BlockSpec((None, Cout, tm), lambda b, mi: (b, 0, mi)),
        compiler_params=pltpu.CompilerParams(
            dimension_semantics=("parallel", "parallel"),
            vmem_limit_bytes=vmem_limit),
        cost_estimate=cost,
    )(*streams, wk, b2)

    # (N, Cout, Ho*Wo) is already NCHW order -> free reshape, no transpose pass.
    return out_flat.reshape(N, Cout, Ho, Wo)


if __name__ == "__main__":
    key = jax.random.PRNGKey(0)
    k1, k2, k3 = jax.random.split(key, 3)

    N, Cin, H, W = 2, 4, 16, 16
    Cout = 8

    x = jax.random.normal(k1, (N, Cin, H, W), dtype=jnp.float32)
    # deterministic "kaiming-ish" uniform init (synthetic, not a checkpoint)
    fan_in = Cin * 3 * 3
    bound = 1.0 / math.sqrt(fan_in)
    w = jax.random.uniform(k2, (Cout, Cin, 3, 3), minval=-bound, maxval=bound,
                           dtype=jnp.float32)
    b = jax.random.uniform(k3, (Cout,), minval=-bound, maxval=bound,
                           dtype=jnp.float32)

    y = jax.jit(downsample)(x, w, b)
    y = jax.block_until_ready(y)

    # reference: exact-f32 XLA conv, same semantics as torch.nn.Conv2d (NCHW)
    y_ref = lax.conv_general_dilated(
        x, w, window_strides=(2, 2), padding=((1, 1), (1, 1)),
        dimension_numbers=("NCHW", "OIHW", "NCHW"),
        precision=lax.Precision.HIGHEST,
    ) + b.reshape(1, Cout, 1, 1)

    assert y.shape == (N, Cout, 8, 8), y.shape
    # kernel streams/weights are bf16 (f32 accumulate) -> ~1e-2-level agreement
    max_err = float(jnp.max(jnp.abs(y - y_ref)))
    assert jnp.allclose(y, y_ref, atol=5e-2, rtol=5e-2), max_err

    print("KERNEL_OK")
</pallas_src>

<mosaic_0001>
module attributes {stable_mosaic.version = 11 : i64} {
  func.func @_conv3x3s2_kernel(%arg0: i32, %arg1: i32, %arg2: memref<1x64x12xbf16, #tpu.memory_space<vmem>>, %arg3: memref<1x64x12xbf16, #tpu.memory_space<vmem>>, %arg4: memref<1x64x12xbf16, #tpu.memory_space<vmem>>, %arg5: memref<3x8x12xbf16, #tpu.memory_space<vmem>>, %arg6: memref<8x1xf32, #tpu.memory_space<vmem>>, %arg7: memref<1x8x64xf32, #tpu.memory_space<vmem>>) attributes {dimension_semantics = [#tpu.dimension_semantics<parallel>, #tpu.dimension_semantics<parallel>], iteration_bounds = array<i64: 2, 1>, scalar_prefetch = 0 : i64, scratch_operands = 0 : i64, tpu.core_type = #tpu.core_type<tc>, window_params = [{transform_indices = @transform_0, window_bounds = array<i64: 1, 64, 12>}, {transform_indices = @transform_1, window_bounds = array<i64: 1, 64, 12>}, {transform_indices = @transform_2, window_bounds = array<i64: 1, 64, 12>}, {pipeline_mode = #tpu.pipeline_mode<synchronous>, transform_indices = @transform_3, window_bounds = array<i64: 3, 8, 12>}, {pipeline_mode = #tpu.pipeline_mode<synchronous>, transform_indices = @transform_4, window_bounds = array<i64: 8, 1>}, {transform_indices = @transform_5, window_bounds = array<i64: 1, 8, 64>}]} {
    %c0 = arith.constant 0 : index
    %c0_0 = arith.constant 0 : index
    %0 = vector.load %arg6[%c0, %c0_0] : memref<8x1xf32, #tpu.memory_space<vmem>>, vector<8x1xf32>
    %1 = vector.shape_cast %0 : vector<8x1xf32> to vector<8x1xf32>
    %2 = vector.broadcast %1 : vector<8x1xf32> to vector<8x64xf32>
    %c0_1 = arith.constant 0 : index
    %c0_2 = arith.constant 0 : index
    %c0_3 = arith.constant 0 : index
    %3 = vector.load %arg5[%c0_1, %c0_2, %c0_3] : memref<3x8x12xbf16, #tpu.memory_space<vmem>>, vector<1x8x12xbf16>
    %4 = vector.shape_cast %3 : vector<1x8x12xbf16> to vector<8x12xbf16>
    %c0_4 = arith.constant 0 : index
    %c0_5 = arith.constant 0 : index
    %c0_6 = arith.constant 0 : index
    %5 = vector.load %arg2[%c0_4, %c0_5, %c0_6] : memref<1x64x12xbf16, #tpu.memory_space<vmem>>, vector<1x64x12xbf16>
    %6 = vector.shape_cast %5 : vector<1x64x12xbf16> to vector<64x12xbf16>
    %cst = arith.constant dense<0.000000e+00> : vector<8x64xf32>
    %7 = tpu.matmul %4, %6, %cst {dimension_numbers = #tpu.dot_dimension_numbers<[1], [1], [0], [0], [0, 0, 1, 0], [], []>} : vector<8x12xbf16>, vector<64x12xbf16>, vector<8x64xf32> -> vector<8x64xf32>
    %8 = arith.addf %2, %7 : vector<8x64xf32>
    %c1 = arith.constant 1 : index
    %c0_7 = arith.constant 0 : index
    %c0_8 = arith.constant 0 : index
    %9 = vector.load %arg5[%c1, %c0_7, %c0_8] : memref<3x8x12xbf16, #tpu.memory_space<vmem>>, vector<1x8x12xbf16>
    %10 = vector.shape_cast %9 : vector<1x8x12xbf16> to vector<8x12xbf16>
    %c0_9 = arith.constant 0 : index
    %c0_10 = arith.constant 0 : index
    %c0_11 = arith.constant 0 : index
    %11 = vector.load %arg3[%c0_9, %c0_10, %c0_11] : memref<1x64x12xbf16, #tpu.memory_space<vmem>>, vector<1x64x12xbf16>
    %12 = vector.shape_cast %11 : vector<1x64x12xbf16> to vector<64x12xbf16>
    %cst_12 = arith.constant dense<0.000000e+00> : vector<8x64xf32>
    %13 = tpu.matmul %10, %12, %cst_12 {dimension_numbers = #tpu.dot_dimension_numbers<[1], [1], [0], [0], [0, 0, 1, 0], [], []>} : vector<8x12xbf16>, vector<64x12xbf16>, vector<8x64xf32> -> vector<8x64xf32>
    %14 = arith.addf %8, %13 : vector<8x64xf32>
    %c2 = arith.constant 2 : index
    %c0_13 = arith.constant 0 : index
    %c0_14 = arith.constant 0 : index
    %15 = vector.load %arg5[%c2, %c0_13, %c0_14] : memref<3x8x12xbf16, #tpu.memory_space<vmem>>, vector<1x8x12xbf16>
    %16 = vector.shape_cast %15 : vector<1x8x12xbf16> to vector<8x12xbf16>
    %c0_15 = arith.constant 0 : index
    %c0_16 = arith.constant 0 : index
    %c0_17 = arith.constant 0 : index
    %17 = vector.load %arg4[%c0_15, %c0_16, %c0_17] : memref<1x64x12xbf16, #tpu.memory_space<vmem>>, vector<1x64x12xbf16>
    %18 = vector.shape_cast %17 : vector<1x64x12xbf16> to vector<64x12xbf16>
    %cst_18 = arith.constant dense<0.000000e+00> : vector<8x64xf32>
    %19 = tpu.matmul %16, %18, %cst_18 {dimension_numbers = #tpu.dot_dimension_numbers<[1], [1], [0], [0], [0, 0, 1, 0], [], []>} : vector<8x12xbf16>, vector<64x12xbf16>, vector<8x64xf32> -> vector<8x64xf32>
    %20 = arith.addf %14, %19 : vector<8x64xf32>
    %c0_19 = arith.constant 0 : index
    %c0_20 = arith.constant 0 : index
    %c0_21 = arith.constant 0 : index
    %21 = vector.load %arg7[%c0_19, %c0_20, %c0_21] : memref<1x8x64xf32, #tpu.memory_space<vmem>>, vector<1x8x64xf32>
    %22 = vector.shape_cast %21 : vector<1x8x64xf32> to vector<8x64xf32>
    %23 = vector.shape_cast %20 : vector<8x64xf32> to vector<1x8x64xf32>
    tpu.vector_store %arg7[%c0_19, %c0_20, %c0_21], %23 {strides = array<i32>} : memref<1x8x64xf32, #tpu.memory_space<vmem>>, vector<1x8x64xf32>,
    return
  }
  func.func @transform_0(%arg0: i32, %arg1: i32) -> (i32, i32, i32) {
    %c0_i32 = arith.constant 0 : i32
    %c0_i32_0 = arith.constant 0 : i32
    return %arg0, %arg1, %c0_i32 : i32, i32, i32
  }
  func.func @transform_1(%arg0: i32, %arg1: i32) -> (i32, i32, i32) {
    %c0_i32 = arith.constant 0 : i32
    %c0_i32_0 = arith.constant 0 : i32
    return %arg0, %arg1, %c0_i32 : i32, i32, i32
  }
  func.func @transform_2(%arg0: i32, %arg1: i32) -> (i32, i32, i32) {
    %c0_i32 = arith.constant 0 : i32
    %c0_i32_0 = arith.constant 0 : i32
    return %arg0, %arg1, %c0_i32 : i32, i32, i32
  }
  func.func @transform_3(%arg0: i32, %arg1: i32) -> (i32, i32, i32) {
    %c0_i32 = arith.constant 0 : i32
    %c0_i32_0 = arith.constant 0 : i32
    %c0_i32_1 = arith.constant 0 : i32
    %c0_i32_2 = arith.constant 0 : i32
    return %c0_i32, %c0_i32_0, %c0_i32_1 : i32, i32, i32
  }
  func.func @transform_4(%arg0: i32, %arg1: i32) -> (i32, i32) {
    %c0_i32 = arith.constant 0 : i32
    %c0_i32_0 = arith.constant 0 : i32
    %c0_i32_1 = arith.constant 0 : i32
    return %c0_i32, %c0_i32_0 : i32, i32
  }
  func.func @transform_5(%arg0: i32, %arg1: i32) -> (i32, i32, i32) {
    %c0_i32 = arith.constant 0 : i32
    %c0_i32_0 = arith.constant 0 : i32
    return %arg0, %c0_i32, %arg1 : i32, i32, i32
  }
}

</mosaic_0001>

<llo_original>
// kernel: downsample.1
$region0: #{downsample.1}
  #allocation0 [shape = 'u32[]', space=smem, size = 0x4, offset = 0x4, fixed_abs, tag = 'smem constant byte address 0x4 - core index']
  #allocation1 [shape = 'u32[144,128]{1,0:T(1,128)}', space=vmem, size = 0x12000, scoped, tag = 'internal scratch']
  %s0 = inlined_call_operand.vmem [shape: bf16[2,64,12], index: 0, kind: input, shape index: {}]
  %s1 = inlined_call_operand.vmem [shape: bf16[2,64,12], index: 1, kind: input, shape index: {}]
  %s2 = inlined_call_operand.vmem [shape: bf16[2,64,12], index: 2, kind: input, shape index: {}]
  %s3 = inlined_call_operand.vmem [shape: bf16[3,8,12], index: 3, kind: input, shape index: {}]
  %s4 = inlined_call_operand.vmem [shape: f32[8,1], index: 4, kind: input, shape index: {}]
  %s5 = inlined_call_operand.vmem [shape: f32[2,8,64], index: 5, kind: output, shape index: {}]
  %s6 = sld [smem:[#allocation0]]
  $region53: #{downsample.1} parent=0
    _
  %s8 = ssub.s32 1, %s6
  %s9 = scalar_select 0, %s8, %s6
  loop: start=0, step=1, limit=4
  $region2: #{downsample.1} parent=0 // loop_pre_header
    _
  $region3: #{downsample.1} parent=0 // loop_header
    %s11 = sphi 0, %s15
    %p12 = scmp.ge.s32.totalorder %s11, 4
    %s18 = sphi 0, %s30
    %s19 = sphi 0, %s26
    %s20 = sphi 0, %s18
    %s21 = sphi 0, %s19
    %s22 = sphi 0, %s20
    %s23 = sphi 0, %s21
    %s35 = sphi 0, %s37
    %s38 = sphi 0, %s35
    %s39 = sphi 0, %s38
    %s55 = sphi 0, %s39
    %s63 = sphi 0, %s65
    %s66 = sphi 0, %s63
    %s67 = sphi 0, %s66
    %s83 = sphi 0, %s67
    %s91 = sphi 0, %s93
    %s94 = sphi 0, %s91
    %s95 = sphi 0, %s94
    %s111 = sphi 0, %s95
    %s115 = sphi 0, %s115
    %s117 = sphi 0, %s115
    %s118 = sphi 0, %s117
    %s132 = sphi 0, %s118
    %s136 = sphi 0, %s136
    %s138 = sphi 0, %s136
    %s139 = sphi 0, %s138
    %s153 = sphi 0, %s139
    %s161 = sphi 0, %s163
    %s164 = sphi 0, %s161
    %s165 = sphi 0, %s164
    %s181 = sphi 0, %s165
  $region4: #{downsample.1} parent=0 // loop_header_branch
    %14 = sbr.rel (%p12) target = $region8
  $region5: #{downsample.1} parent=0 // loop_body
    %s16 = ssub.s32 %s11, 1
    %s17 = ssub.s32 %s11, 2
    %s24 = sadd.s32 1, %s19
    %p25 = scmp.ge.s32.totalorder %s24, 1
    %s26 = scalar_select %p25, 0, %s24
    %s27 = sadd.s32 1, %s18
    %s28 = scalar_select %p25, %s27, %s18
    %p29 = scmp.ge.s32.totalorder %s28, 2
    %s30 = scalar_select %p29, 0, %s28
    %s31 = ssub.s32 %s18, %s30
    %s32 = ssub.s32 %s19, %s26
    %s33 = sor.u32 %s31, %s32
    %p34 = scmp.eq.s32.totalorder %s33, 0
    %s36 = sadd.s32 %s35, 1
    %s37 = scalar_select %p34, %s35, %s36
    %p40 = pneg %p34
    %p41 = scmp.eq.s32.totalorder %s11, 1
    %p42 = por %p40, %p41
    %p43 = scmp.ne.s32.totalorder %s35, %s38
    %p44 = scmp.eq.s32.totalorder %s11, 0
    %p45 = por %p43, %p44
    %p46 = scmp.ne.s32.totalorder %s35, %s38
    %p47 = scmp.eq.s32.totalorder %s16, 1
    %p48 = por %p46, %p47
    %p49 = scmp.ne.s32.totalorder %s38, %s39
    %p50 = scmp.eq.s32.totalorder %s16, 0
    %p51 = por %p49, %p50
    %p52 = scmp.ne.s32.totalorder %s38, %s39
    %p53 = scmp.eq.s32.totalorder %s17, 1
    %p54 = por %p52, %p53
    %p56 = scmp.ne.s32.totalorder %s39, %s55
    %p57 = scmp.eq.s32.totalorder %s17, 0
    %p58 = por %p56, %p57
    %s59 = ssub.s32 %s18, %s30
    %s60 = ssub.s32 %s19, %s26
    %s61 = sor.u32 %s59, %s60
    %p62 = scmp.eq.s32.totalorder %s61, 0
    %s64 = sadd.s32 %s63, 1
    %s65 = scalar_select %p62, %s63, %s64
    %p68 = pneg %p62
    %p69 = scmp.eq.s32.totalorder %s11, 1
    %p70 = por %p68, %p69
    %p71 = scmp.ne.s32.totalorder %s63, %s66
    %p72 = scmp.eq.s32.totalorder %s11, 0
    %p73 = por %p71, %p72
    %p74 = scmp.ne.s32.totalorder %s63, %s66
    %p75 = scmp.eq.s32.totalorder %s16, 1
    %p76 = por %p74, %p75
    %p77 = scmp.ne.s32.totalorder %s66, %s67
    %p78 = scmp.eq.s32.totalorder %s16, 0
    %p79 = por %p77, %p78
    %p80 = scmp.ne.s32.totalorder %s66, %s67
    %p81 = scmp.eq.s32.totalorder %s17, 1
    %p82 = por %p80, %p81
    %p84 = scmp.ne.s32.totalorder %s67, %s83
    %p85 = scmp.eq.s32.totalorder %s17, 0
    %p86 = por %p84, %p85
    %s87 = ssub.s32 %s18, %s30
    %s88 = ssub.s32 %s19, %s26
    %s89 = sor.u32 %s87, %s88
    %p90 = scmp.eq.s32.totalorder %s89, 0
    %s92 = sadd.s32 %s91, 1
    %s93 = scalar_select %p90, %s91, %s92
    %p96 = pneg %p90
    %p97 = scmp.eq.s32.totalorder %s11, 1
    %p98 = por %p96, %p97
    %p99 = scmp.ne.s32.totalorder %s91, %s94
    %p100 = scmp.eq.s32.totalorder %s11, 0
    %p101 = por %p99, %p100
    %p102 = scmp.ne.s32.totalorder %s91, %s94
    %p103 = scmp.eq.s32.totalorder %s16, 1
    %p104 = por %p102, %p103
    %p105 = scmp.ne.s32.totalorder %s94, %s95
    %p106 = scmp.eq.s32.totalorder %s16, 0
    %p107 = por %p105, %p106
    %p108 = scmp.ne.s32.totalorder %s94, %s95
    %p109 = scmp.eq.s32.totalorder %s17, 1
    %p110 = por %p108, %p109
    %p112 = scmp.ne.s32.totalorder %s95, %s111
    %p113 = scmp.eq.s32.totalorder %s17, 0
    %p114 = por %p112, %p113
    %s116 = sadd.s32 %s115, 1
    %p119 = scmp.eq.s32.totalorder %s11, 1
    %p120 = scmp.ne.s32.totalorder %s115, %s117
    %p121 = scmp.eq.s32.totalorder %s11, 0
    %p122 = por %p120, %p121
    %p123 = scmp.ne.s32.totalorder %s115, %s117
    %p124 = scmp.eq.s32.totalorder %s16, 1
    %p125 = por %p123, %p124
    %p126 = scmp.ne.s32.totalorder %s117, %s118
    %p127 = scmp.eq.s32.totalorder %s16, 0
    %p128 = por %p126, %p127
    %p129 = scmp.ne.s32.totalorder %s117, %s118
    %p130 = scmp.eq.s32.totalorder %s17, 1
    %p131 = por %p129, %p130
    %p133 = scmp.ne.s32.totalorder %s118, %s132
    %p134 = scmp.eq.s32.totalorder %s17, 0
    %p135 = por %p133, %p134
    %s137 = sadd.s32 %s136, 1
    %p140 = scmp.eq.s32.totalorder %s11, 1
    %p141 = scmp.ne.s32.totalorder %s136, %s138
    %p142 = scmp.eq.s32.totalorder %s11, 0
    %p143 = por %p141, %p142
    %p144 = scmp.ne.s32.totalorder %s136, %s138
    %p145 = scmp.eq.s32.totalorder %s16, 1
    %p146 = por %p144, %p145
    %p147 = scmp.ne.s32.totalorder %s138, %s139
    %p148 = scmp.eq.s32.totalorder %s16, 0
    %p149 = por %p147, %p148
    %p150 = scmp.ne.s32.totalorder %s138, %s139
    %p151 = scmp.eq.s32.totalorder %s17, 1
    %p152 = por %p150, %p151
    %p154 = scmp.ne.s32.totalorder %s139, %s153
    %p155 = scmp.eq.s32.totalorder %s17, 0
    %p156 = por %p154, %p155
    %s157 = ssub.s32 %s18, %s30
    %s158 = ssub.s32 %s19, %s26
    %s159 = sor.u32 %s157, %s158
    %p160 = scmp.eq.s32.totalorder %s159, 0
    %s162 = sadd.s32 %s161, 1
    %s163 = scalar_select %p160, %s161, %s162
    %p166 = pneg %p160
    %p167 = scmp.eq.s32.totalorder %s11, 1
    %p168 = por %p166, %p167
    %p169 = scmp.ne.s32.totalorder %s161, %s164
    %p170 = scmp.eq.s32.totalorder %s11, 0
    %p171 = por %p169, %p170
    %p172 = scmp.ne.s32.totalorder %s161, %s164
    %p173 = scmp.eq.s32.totalorder %s16, 1
    %p174 = por %p172, %p173
    %p175 = scmp.ne.s32.totalorder %s164, %s165
    %p176 = scmp.eq.s32.totalorder %s16, 0
    %p177 = por %p175, %p176
    %p178 = scmp.ne.s32.totalorder %s164, %s165
    %p179 = scmp.eq.s32.totalorder %s17, 1
    %p180 = por %p178, %p179
    %p182 = scmp.ne.s32.totalorder %s165, %s181
    %p183 = scmp.eq.s32.totalorder %s17, 0
    %p184 = por %p182, %p183
    %p185 = scmp.le.s32.totalorder 1, %s11
    %p186 = scmp.lt.s32.totalorder %s11, 3
    %p187 = pnand %p185, %p186
    %p188 = pneg %p187
    // Predicated region
    $region9: #{downsample.1} parent=5 // pred_check
      _
    $region10: #{downsample.1} parent=5 // pred_check_branch
      %190 = sbr.rel (%p187) target = $region12
    $region11: #{downsample.1} parent=5 // pred_region
      %s191 = ssub.s32 %s11, 1
      // Predicated region
      $region13: #{downsample.1} parent=11 // pred_check
        %p192 = pneg %p128
      $region14: #{downsample.1} parent=11 // pred_check_branch
        %194 = sbr.rel (%p192) target = $region16
      $region15: #{downsample.1} parent=11 // pred_region
        _
      $region16: #{downsample.1} parent=11 // pred_fallthru
        _
      // Predicated region
      $region17: #{downsample.1} parent=11 // pred_check
        %p195 = pneg %p149
      $region18: #{downsample.1} parent=11 // pred_check_branch
        %197 = sbr.rel (%p195) target = $region20
      $region19: #{downsample.1} parent=11 // pred_region
        _
      $region20: #{downsample.1} parent=11 // pred_fallthru
        _
    $region12: #{downsample.1} parent=5 // pred_fallthru
      _
    %p198 = scmp.lt.s32.totalorder %s11, 2
    // Predicated region
    $region21: #{downsample.1} parent=5 // pred_check
      %p199 = pneg %p198
    $region22: #{downsample.1} parent=5 // pred_check_branch
      %201 = sbr.rel (%p199) target = $region24
    $region23: #{downsample.1} parent=5 // pred_region
      // Predicated region
      $region25: #{downsample.1} parent=23 // pred_check
        %p202 = pneg %p45
      $region26: #{downsample.1} parent=23 // pred_check_branch
        %204 = sbr.rel (%p202) target = $region28
      $region27: #{downsample.1} parent=23 // pred_region
        %s205 = smul.u32 8, %s19
        %p206 = scmp.lt.s32.totalorder %s18, 1
        %s207 = scalar_select %p206, %s18, 1
        %p208 = scmp.lt.s32.totalorder %s205, 7
        %s209 = scalar_select %p208, %s205, 7
        %s210 = smul.addr %s207, 8
        %s211 = sadd.s32 %s209, %s210
        %s212 = smul.addr %s211, 4
        %s213 = scalar_lea.vmem %s0, %s212
        %s214 = smul.u32 8, %s19
      $region28: #{downsample.1} parent=23 // pred_fallthru
        _
      // Predicated region
      $region29: #{downsample.1} parent=23 // pred_check
        %p215 = pneg %p73
      $region30: #{downsample.1} parent=23 // pred_check_branch
        %217 = sbr.rel (%p215) target = $region32
      $region31: #{downsample.1} parent=23 // pred_region
        %s218 = smul.u32 8, %s19
        %p219 = scmp.lt.s32.totalorder %s18, 1
        %s220 = scalar_select %p219, %s18, 1
        %p221 = scmp.lt.s32.totalorder %s218, 7
        %s222 = scalar_select %p221, %s218, 7
        %s223 = smul.addr %s220, 8
        %s224 = sadd.s32 %s222, %s223
        %s225 = smul.addr %s224, 4
        %s226 = scalar_lea.vmem %s1, %s225
        %s227 = smul.u32 8, %s19
      $region32: #{downsample.1} parent=23 // pred_fallthru
        _
      // Predicated region
      $region33: #{downsample.1} parent=23 // pred_check
        %p228 = pneg %p101
      $region34: #{downsample.1} parent=23 // pred_check_branch
        %230 = sbr.rel (%p228) target = $region36
      $region35: #{downsample.1} parent=23 // pred_region
        %s231 = smul.u32 8, %s19
        %p232 = scmp.lt.s32.totalorder %s18, 1
        %s233 = scalar_select %p232, %s18, 1
        %p234 = scmp.lt.s32.totalorder %s231, 7
        %s235 = scalar_select %p234, %s231, 7
        %s236 = smul.addr %s233, 8
        %s237 = sadd.s32 %s235, %s236
        %s238 = smul.addr %s237, 4
        %s239 = scalar_lea.vmem %s2, %s238
        %s240 = smul.u32 8, %s19
      $region36: #{downsample.1} parent=23 // pred_fallthru
        _
    $region24: #{downsample.1} parent=5 // pred_fallthru
      _
    %p241 = scmp.le.s32.totalorder 1, %s11
    %p242 = scmp.lt.s32.totalorder %s11, 3
    %p243 = pnand %p241, %p242
    %p244 = pneg %p243
    // Predicated region
    $region37: #{downsample.1} parent=5 // pred_check
      _
    $region38: #{downsample.1} parent=5 // pred_check_branch
      %246 = sbr.rel (%p243) target = $region40
    $region39: #{downsample.1} parent=5 // pred_region
      %s247 = ssub.s32 %s11, 1
      %s248 = smul.u32 8, %s21
      %p249 = scmp.lt.s32.totalorder %s20, 1
      %s250 = scalar_select %p249, %s20, 1
      %p251 = scmp.lt.s32.totalorder %s248, 7
      %s252 = scalar_select %p251, %s248, 7
      %s253 = smul.addr %s250, 8
      %s254 = sadd.s32 %s252, %s253
      %s255 = smul.addr %s254, 4
      %s256 = scalar_lea.vmem %s0, %s255
      %p257 = pneg %p51
      %p258 = pneg %p48
      %s259 = smul.u32 8, %s21
      %p260 = scmp.lt.s32.totalorder %s20, 1
      %s261 = scalar_select %p260, %s20, 1
      %p262 = scmp.lt.s32.totalorder %s259, 7
      %s263 = scalar_select %p262, %s259, 7
      %s264 = smul.addr %s261, 8
      %s265 = sadd.s32 %s263, %s264
      %s266 = smul.addr %s265, 4
      %s267 = scalar_lea.vmem %s1, %s266
      %p268 = pneg %p79
      %p269 = pneg %p76
      %s270 = smul.u32 8, %s21
      %p271 = scmp.lt.s32.totalorder %s20, 1
      %s272 = scalar_select %p271, %s20, 1
      %p273 = scmp.lt.s32.totalorder %s270, 7
      %s274 = scalar_select %p273, %s270, 7
      %s275 = smul.addr %s272, 8
      %s276 = sadd.s32 %s274, %s275
      %s277 = smul.addr %s276, 4
      %s278 = scalar_lea.vmem %s2, %s277
      %p279 = pneg %p107
      %p280 = pneg %p104
      %p281 = pneg %p128
      %p282 = pneg %p125
      %p283 = pneg %p149
      %p284 = pneg %p146
      %p285 = pneg %p177
      %p286 = pneg %p174
      %p287 = scmp.lt.s32.totalorder %s20, 1
      %s288 = scalar_select %p287, %s20, 1
      %p289 = scmp.lt.s32.totalorder %s21, 0
      %s290 = scalar_select %p289, %s21, 0
      %s291 = sadd.s32 %s290, %s288
      %s292 = smul.addr %s291, 8
      %s293 = scalar_lea.vmem %s5, %s292
      %s294 = smul.u32 8, %s21
      %p295 = scmp.lt.s32.totalorder %s20, 1
      %s296 = scalar_select %p295, %s20, 1
      %p297 = scmp.lt.s32.totalorder %s294, 7
      %s298 = scalar_select %p297, %s294, 7
      %s299 = smul.addr %s296, 8
      %s300 = sadd.s32 %s298, %s299
      %s301 = smul.addr %s300, 4
      %s302 = scalar_lea.vmem %s0, %s301
      %s303 = smul.u32 8, %s21
      %s304 = smul.u32 8, %s21
      %p305 = scmp.lt.s32.totalorder %s20, 1
      %s306 = scalar_select %p305, %s20, 1
      %p307 = scmp.lt.s32.totalorder %s304, 7
      %s308 = scalar_select %p307, %s304, 7
      %s309 = smul.addr %s306, 8
      %s310 = sadd.s32 %s308, %s309
      %s311 = smul.addr %s310, 4
      %s312 = scalar_lea.vmem %s1, %s311
      %s313 = smul.u32 8, %s21
      %s314 = smul.u32 8, %s21
      %p315 = scmp.lt.s32.totalorder %s20, 1
      %s316 = scalar_select %p315, %s20, 1
      %p317 = scmp.lt.s32.totalorder %s314, 7
      %s318 = scalar_select %p317, %s314, 7
      %s319 = smul.addr %s316, 8
      %s320 = sadd.s32 %s318, %s319
      %s321 = smul.addr %s320, 4
      %s322 = scalar_lea.vmem %s2, %s321
      %s323 = smul.u32 8, %s21
      %p324 = scmp.lt.s32.totalorder %s20, 1
      %s325 = scalar_select %p324, %s20, 1
      %p326 = scmp.lt.s32.totalorder %s21, 0
      %s327 = scalar_select %p326, %s21, 0
      %s328 = sadd.s32 %s327, %s325
      %s329 = smul.addr %s328, 8
      %s330 = scalar_lea.vmem %s5, %s329
      %v332 = vld [vmem:[%s4] sm:$0xff]
      %334 = vset.pattern.permute.xlu0 0
      %335 = vperm.xlu0 %334, %v332
      %v336 = vpop.permute.xlu0 %335
      %v338 = vld [vmem:[%s3] sm:$0xf]
      %v339 = vld [vmem:[%s302] sm:$0xf]
      %v340 = vld [vmem:[%s302 + $0x4] sm:$0xf]
      %v341 = vld [vmem:[%s302 + $0x8] sm:$0xf]
      %v342 = vld [vmem:[%s302 + $0xc] sm:$0xf]
      %v343 = vld [vmem:[%s302 + $0x10] sm:$0xf]
      %v344 = vld [vmem:[%s302 + $0x14] sm:$0xf]
      %v345 = vld [vmem:[%s302 + $0x18] sm:$0xf]
      %v346 = vld [vmem:[%s302 + $0x1c] sm:$0xf]
      %v355 = vunpack.c.l.b16 %v339
      %v356 = vunpack.c.l.b16 %v340
      %v357 = vunpack.c.l.b16 %v341
      %v358 = vunpack.c.l.b16 %v342
      %v359 = vunpack.c.l.b16 %v343
      %v360 = vunpack.c.l.b16 %v344
      %v361 = vunpack.c.l.b16 %v345
      %v362 = vunpack.c.l.b16 %v346
      %v363 = vpack.c.b16 %v356, %v355
      %v364 = vpack.c.b16 %v358, %v357
      %v365 = vpack.c.b16 %v360, %v359
      %v366 = vpack.c.b16 %v362, %v361
      %vm367 = vcmask 97280
      %v369 = vsel %vm367, %v338, 0
      %v372 = vsel %vm367, %v363, 0
      %v375 = vsel %vm367, %v364, 0
      %v378 = vsel %vm367, %v365, 0
      %v381 = vsel %vm367, %v366, 0
      %383 = vmatprep.subr.bf16.mxu0 0
      %384 = vmatpush1.bf16.xpose.msra.mxu0 0
      %385 = vmatprep.subr.bf16.mxu0 0
      %386 = vmatpush1.bf16.xpose.msra.mxu0 0
      %387 = vmatprep.subr.bf16.mxu0 0
      %388 = vmatpush1.bf16.xpose.msra.mxu0 0
      %389 = vmatprep.subr.bf16.mxu0 0
      %390 = vmatpush1.bf16.xpose.msra.mxu0 0
      %391 = vmatprep.subr.bf16.mxu0 0
      %392 = vmatpush1.bf16.xpose.msra.mxu0 %v381
      %393 = vmatprep.subr.bf16.mxu0 0
      %394 = vmatpush1.bf16.xpose.msra.mxu0 %v378
      %395 = vmatprep.subr.bf16.mxu0 0
      %396 = vmatpush1.bf16.xpose.msra.mxu0 %v375
      %397 = vmatprep.subr.bf16.mxu0 0
      %398 = vmatpush1.bf16.xpose.msra.mxu0 %v372
      %399 = vmatprep.subr.bf16.mxu0 0
      %400 = vmatpush2.bf16.xpose.msra.mxu0 0
      %401 = vmatprep.subr.bf16.mxu0 0
      %402 = vmatpush2.bf16.xpose.msra.mxu0 0
      %403 = vmatprep.subr.bf16.mxu0 0
      %404 = vmatpush2.bf16.xpose.msra.mxu0 0
      %405 = vmatprep.subr.bf16.mxu0 0
      %406 = vmatpush2.bf16.xpose.msra.mxu0 0
      %407 = vmatprep.subr.bf16.mxu0 0
      %408 = vmatpush2.bf16.xpose.msra.mxu0 0
      %409 = vmatprep.subr.bf16.mxu0 0
      %410 = vmatpush2.bf16.xpose.msra.mxu0 0
      %411 = vmatprep.subr.bf16.mxu0 0
      %412 = vmatpush2.bf16.xpose.msra.mxu0 0
      %413 = vmatprep.subr.bf16.mxu0 0
      %414 = vmatpush2.bf16.xpose.msra.mxu0 0
      %415 = vmatprep.mubr.bf16.mxu0 0
      %416 = vmatmul.mubr.bf16.gmra.mxu0 %v369
      %v417 = vpop.f32.mrf.mxu0
      %v418 = vadd.f32 0.0, %v417
      %v419 = vpop.f32.mrf.mxu0
      %v420 = vpop.f32.mrf.mxu0
      %v421 = vpop.f32.mrf.mxu0
      %422 = vdwg.mxu0
      %v423 = vadd.f32 %v336, %v418
      %s424 = scalar_lea.vmem %s3, 4
      %v425 = vld [vmem:[%s424] sm:$0xf]
      %v426 = vld [vmem:[%s312] sm:$0xf]
      %v427 = vld [vmem:[%s312 + $0x4] sm:$0xf]
      %v428 = vld [vmem:[%s312 + $0x8] sm:$0xf]
      %v429 = vld [vmem:[%s312 + $0xc] sm:$0xf]
      %v430 = vld [vmem:[%s312 + $0x10] sm:$0xf]
      %v431 = vld [vmem:[%s312 + $0x14] sm:$0xf]
      %v432 = vld [vmem:[%s312 + $0x18] sm:$0xf]
      %v433 = vld [vmem:[%s312 + $0x1c] sm:$0xf]
      %v442 = vunpack.c.l.b16 %v426
      %v443 = vunpack.c.l.b16 %v427
      %v444 = vunpack.c.l.b16 %v428
      %v445 = vunpack.c.l.b16 %v429
      %v446 = vunpack.c.l.b16 %v430
      %v447 = vunpack.c.l.b16 %v431
      %v448 = vunpack.c.l.b16 %v432
      %v449 = vunpack.c.l.b16 %v433
      %v450 = vpack.c.b16 %v443, %v442
      %v451 = vpack.c.b16 %v445, %v444
      %v452 = vpack.c.b16 %v447, %v446
      %v453 = vpack.c.b16 %v449, %v448
      %v455 = vsel %vm367, %v425, 0
      %v458 = vsel %vm367, %v450, 0
      %v461 = vsel %vm367, %v451, 0
      %v464 = vsel %vm367, %v452, 0
      %v467 = vsel %vm367, %v453, 0
      %469 = vmatprep.subr.bf16.mxu0 0
      %470 = vmatpush1.bf16.xpose.msra.mxu0 0
      %471 = vmatprep.subr.bf16.mxu0 0
      %472 = vmatpush1.bf16.xpose.msra.mxu0 0
      %473 = vmatprep.subr.bf16.mxu0 0
      %474 = vmatpush1.bf16.xpose.msra.mxu0 0
      %475 = vmatprep.subr.bf16.mxu0 0
      %476 = vmatpush1.bf16.xpose.msra.mxu0 0
      %477 = vmatprep.subr.bf16.mxu0 0
      %478 = vmatpush1.bf16.xpose.msra.mxu0 %v467
      %479 = vmatprep.subr.bf16.mxu0 0
      %480 = vmatpush1.bf16.xpose.msra.mxu0 %v464
      %481 = vmatprep.subr.bf16.mxu0 0
      %482 = vmatpush1.bf16.xpose.msra.mxu0 %v461
      %483 = vmatprep.subr.bf16.mxu0 0
      %484 = vmatpush1.bf16.xpose.msra.mxu0 %v458
      %485 = vmatprep.subr.bf16.mxu0 0
      %486 = vmatpush2.bf16.xpose.msra.mxu0 0
      %487 = vmatprep.subr.bf16.mxu0 0
      %488 = vmatpush2.bf16.xpose.msra.mxu0 0
      %489 = vmatprep.subr.bf16.mxu0 0
      %490 = vmatpush2.bf16.xpose.msra.mxu0 0
      %491 = vmatprep.subr.bf16.mxu0 0
      %492 = vmatpush2.bf16.xpose.msra.mxu0 0
      %493 = vmatprep.subr.bf16.mxu0 0
      %494 = vmatpush2.bf16.xpose.msra.mxu0 0
      %495 = vmatprep.subr.bf16.mxu0 0
      %496 = vmatpush2.bf16.xpose.msra.mxu0 0
      %497 = vmatprep.subr.bf16.mxu0 0
      %498 = vmatpush2.bf16.xpose.msra.mxu0 0
      %499 = vmatprep.subr.bf16.mxu0 0
      %500 = vmatpush2.bf16.xpose.msra.mxu0 0
      %501 = vmatprep.mubr.bf16.mxu0 0
      %502 = vmatmul.mubr.bf16.gmra.mxu0 %v455
      %v503 = vpop.f32.mrf.mxu0
      %v504 = vadd.f32 0.0, %v503
      %v505 = vpop.f32.mrf.mxu0
      %v506 = vpop.f32.mrf.mxu0
      %v507 = vpop.f32.mrf.mxu0
      %508 = vdwg.mxu0
      %v509 = vadd.f32 %v423, %v504
      %s510 = scalar_lea.vmem %s3, 8
      %v511 = vld [vmem:[%s510] sm:$0xf]
      %v512 = vld [vmem:[%s322] sm:$0xf]
      %v513 = vld [vmem:[%s322 + $0x4] sm:$0xf]
      %v514 = vld [vmem:[%s322 + $0x8] sm:$0xf]
      %v515 = vld [vmem:[%s322 + $0xc] sm:$0xf]
      %v516 = vld [vmem:[%s322 + $0x10] sm:$0xf]
      %v517 = vld [vmem:[%s322 + $0x14] sm:$0xf]
      %v518 = vld [vmem:[%s322 + $0x18] sm:$0xf]
      %v519 = vld [vmem:[%s322 + $0x1c] sm:$0xf]
      %v528 = vunpack.c.l.b16 %v512
      %v529 = vunpack.c.l.b16 %v513
      %v530 = vunpack.c.l.b16 %v514
      %v531 = vunpack.c.l.b16 %v515
      %v532 = vunpack.c.l.b16 %v516
      %v533 = vunpack.c.l.b16 %v517
      %v534 = vunpack.c.l.b16 %v518
      %v535 = vunpack.c.l.b16 %v519
      %v536 = vpack.c.b16 %v529, %v528
      %v537 = vpack.c.b16 %v531, %v530
      %v538 = vpack.c.b16 %v533, %v532
      %v539 = vpack.c.b16 %v535, %v534
      %v541 = vsel %vm367, %v511, 0
      %v544 = vsel %vm367, %v536, 0
      %v547 = vsel %vm367, %v537, 0
      %v550 = vsel %vm367, %v538, 0
      %v553 = vsel %vm367, %v539, 0
      %555 = vmatprep.subr.bf16.mxu0 0
      %556 = vmatpush1.bf16.xpose.msra.mxu0 0
      %557 = vmatprep.subr.bf16.mxu0 0
      %558 = vmatpush1.bf16.xpose.msra.mxu0 0
      %559 = vmatprep.subr.bf16.mxu0 0
      %560 = vmatpush1.bf16.xpose.msra.mxu0 0
      %561 = vmatprep.subr.bf16.mxu0 0
      %562 = vmatpush1.bf16.xpose.msra.mxu0 0
      %563 = vmatprep.subr.bf16.mxu0 0
      %564 = vmatpush1.bf16.xpose.msra.mxu0 %v553
      %565 = vmatprep.subr.bf16.mxu0 0
      %566 = vmatpush1.bf16.xpose.msra.mxu0 %v550
      %567 = vmatprep.subr.bf16.mxu0 0
      %568 = vmatpush1.bf16.xpose.msra.mxu0 %v547
      %569 = vmatprep.subr.bf16.mxu0 0
      %570 = vmatpush1.bf16.xpose.msra.mxu0 %v544
      %571 = vmatprep.subr.bf16.mxu0 0
      %572 = vmatpush2.bf16.xpose.msra.mxu0 0
      %573 = vmatprep.subr.bf16.mxu0 0
      %574 = vmatpush2.bf16.xpose.msra.mxu0 0
      %575 = vmatprep.subr.bf16.mxu0 0
      %576 = vmatpush2.bf16.xpose.msra.mxu0 0
      %577 = vmatprep.subr.bf16.mxu0 0
      %578 = vmatpush2.bf16.xpose.msra.mxu0 0
      %579 = vmatprep.subr.bf16.mxu0 0
      %580 = vmatpush2.bf16.xpose.msra.mxu0 0
      %581 = vmatprep.subr.bf16.mxu0 0
      %582 = vmatpush2.bf16.xpose.msra.mxu0 0
      %583 = vmatprep.subr.bf16.mxu0 0
      %584 = vmatpush2.bf16.xpose.msra.mxu0 0
      %585 = vmatprep.subr.bf16.mxu0 0
      %586 = vmatpush2.bf16.xpose.msra.mxu0 0
      %587 = vmatprep.mubr.bf16.mxu0 0
      %588 = vmatmul.mubr.bf16.gmra.mxu0 %v541
      %v589 = vpop.f32.mrf.mxu0
      %v590 = vadd.f32 0.0, %v589
      %v591 = vpop.f32.mrf.mxu0
      %v592 = vpop.f32.mrf.mxu0
      %v593 = vpop.f32.mrf.mxu0
      %594 = vdwg.mxu0
      %v595 = vadd.f32 %v509, %v590
      %vm596 = vcmask 523264
      %597 = vst.msk [vmem:[%s330] sm:$0xff] %vm596, %v595
      %p598 = scmp.lt.s32.totalorder %s20, 1
      %s599 = scalar_select %p598, %s20, 1
      %p600 = scmp.lt.s32.totalorder %s21, 0
      %s601 = scalar_select %p600, %s21, 0
      %s602 = sadd.s32 %s601, %s599
      %s603 = smul.addr %s602, 8
      %s604 = scalar_lea.vmem %s5, %s603
      // Predicated region
      $region41: #{downsample.1} parent=39 // pred_check
        %p605 = pneg %p174
      $region42: #{downsample.1} parent=39 // pred_check_branch
        %607 = sbr.rel (%p605) target = $region44
      $region43: #{downsample.1} parent=39 // pred_region
        _
      $region44: #{downsample.1} parent=39 // pred_fallthru
        _
    $region40: #{downsample.1} parent=5 // pred_fallthru
      _
    %p608 = scmp.le.s32.totalorder 2, %s11
    // Predicated region
    $region45: #{downsample.1} parent=5 // pred_check
      %p609 = pneg %p608
    $region46: #{downsample.1} parent=5 // pred_check_branch
      %611 = sbr.rel (%p609) target = $region48
    $region47: #{downsample.1} parent=5 // pred_region
      %s612 = ssub.s32 %s11, 2
      // Predicated region
      $region49: #{downsample.1} parent=47 // pred_check
        %p613 = pneg %p180
      $region50: #{downsample.1} parent=47 // pred_check_branch
        %615 = sbr.rel (%p613) target = $region52
      $region51: #{downsample.1} parent=47 // pred_region
        %p616 = scmp.lt.s32.totalorder %s22, 1
        %s617 = scalar_select %p616, %s22, 1
        %p618 = scmp.lt.s32.totalorder %s23, 0
        %s619 = scalar_select %p618, %s23, 0
        %s620 = sadd.s32 %s619, %s617
        %s621 = smul.addr %s620, 8
        %s622 = scalar_lea.vmem %s5, %s621
      $region52: #{downsample.1} parent=47 // pred_fallthru
        _
    $region48: #{downsample.1} parent=5 // pred_fallthru
      _
  $region6: #{downsample.1} parent=0 // loop_footer
    %s15 = sadd.s32 1, %s11
  $region7: #{downsample.1} parent=0 // loop_footer_branch
    %10 = sbr.rel target = $region3
  $region8: #{downsample.1} parent=0 // loop_exit
    _

</llo_original>
